<compile_context>
chip_gen: v5e
topology: v5e:2x2
jax: 0.10.0
libtpu: 0.0.40
codegen_flags: <defaults>
</compile_context>

<pallas_src>
import math

import jax
import jax.numpy as jnp
from jax.experimental import pallas as pl
from jax.experimental.pallas import tpu as pltpu


def _prompt_forward_kernel(w_hbm_ref, o_hbm_ref, copy_sem):
    # Entire forward pass: copy the prompt weight to the output, HBM -> HBM,
    # purely on the DMA engine.
    cp = pltpu.make_async_copy(w_hbm_ref, o_hbm_ref, copy_sem)
    cp.start()
    cp.wait()


def prompt_only_forward(weight: jax.Array) -> jax.Array:
    """Pallas implementation of PromptOnlyModel.forward().

    Returns the prompt embedding matrix (the nn.Linear weight) unchanged.
    """
    P, D = weight.shape
    nbytes = P * D * weight.dtype.itemsize

    return pl.pallas_call(
        _prompt_forward_kernel,
        out_shape=jax.ShapeDtypeStruct((P, D), weight.dtype),
        # No grid, no tiling: both refs stay in HBM; the kernel issues one DMA.
        in_specs=[pl.BlockSpec(memory_space=pl.ANY)],
        out_specs=pl.BlockSpec(memory_space=pl.ANY),
        scratch_shapes=[pltpu.SemaphoreType.DMA(())],
        # Pure memory op: read P*D, write P*D, zero flops.
        cost_estimate=pl.CostEstimate(
            flops=0, transcendentals=0, bytes_accessed=2 * nbytes
        ),
    )(weight)


def init_prompt_weight(key, prompt_length: int, dim_out: int) -> jax.Array:
    """Deterministic init mimicking nn.Linear default (kaiming uniform).

    torch.nn.Linear(dim_out, prompt_length).weight has shape
    (prompt_length, dim_out) and is initialized U(-1/sqrt(dim_out),
    1/sqrt(dim_out)).
    """
    bound = 1.0 / math.sqrt(dim_out)
    return jax.random.uniform(
        key, (prompt_length, dim_out), dtype=jnp.float32,
        minval=-bound, maxval=bound,
    )


if __name__ == "__main__":
    prompt_length = 8    # number of soft-prompt tokens
    dim_out = 32         # embedding dimension

    key = jax.random.PRNGKey(0)
    weight = init_prompt_weight(key, prompt_length, dim_out)

    out = prompt_only_forward(weight)
    out = jax.block_until_ready(out)

    # Sanity: forward() must return the weight exactly.
    assert out.shape == (prompt_length, dim_out)
    assert out.dtype == weight.dtype
    assert bool(jnp.all(out == weight))

    print("KERNEL_OK")
</pallas_src>

<mosaic_0001>
module attributes {stable_mosaic.version = 11 : i64} {
  func.func @_prompt_forward_kernel(%arg0: memref<8x32xf32, #tpu.memory_space<any>>, %arg1: memref<8x32xf32, #tpu.memory_space<any>>, %arg2: memref<!tpu.dma_semaphore, #tpu.memory_space<semaphore_mem>>) attributes {dimension_semantics = [], scalar_prefetch = 0 : i64, scratch_operands = 1 : i64, tpu.core_type = #tpu.core_type<tc>} {
    tpu.enqueue_dma source(%arg0 : memref<8x32xf32, #tpu.memory_space<any>>) target(%arg1 : memref<8x32xf32, #tpu.memory_space<any>>) target_semaphore(%arg2 : memref<!tpu.dma_semaphore, #tpu.memory_space<semaphore_mem>>)
    tpu.wait_dma2 semaphore(%arg2 : memref<!tpu.dma_semaphore, #tpu.memory_space<semaphore_mem>>) src(%arg0 : memref<8x32xf32, #tpu.memory_space<any>>) dst(%arg1 : memref<8x32xf32, #tpu.memory_space<any>>)
    return
  }
}

</mosaic_0001>

<llo_original>
// kernel: tpu_custom_call.1
$region0: #{tpu_custom_call.1}
  #allocation0 [shape = 'u32[]', space=smem, size = 0x4, offset = 0x4, fixed_abs, tag = 'smem constant byte address 0x4 - core index']
  #allocation1 [shape = 'u32[72,128]{1,0:T(1,128)}', space=vmem, size = 0x9000, scoped, tag = 'internal scratch']
  #allocation2 [shape = 's32[1]{0}', space=sflag, size = 0x4, scoped, tag = 'scratch operand']
  #allocation3 [shape = 's32[]', space=sflag, size = 0x4, offset = 0, fixed_abs, tag = 'sflag constant byte address 0x0 - dummy sync flag']
  #allocation4 [shape = 'u32[0]{0}', space=smem, size = 0, offset = 0, fixed_abs, tag = 'smem constant byte address 0x0 - null']
  %s0 = inlined_call_operand.hbm [shape: f32[8,32], index: 0, kind: input, shape index: {}]
  %s1 = inlined_call_operand.hbm [shape: f32[8,32], index: 1, kind: output, shape index: {}]
  %s2 = sld [smem:[#allocation0]]
  $region2: #{tpu_custom_call.1} parent=0
    _
  %s4 = ssub.s32 1, %s2
  %s5 = scalar_select 0, %s4, %s2
  %s7 = sshll.u32 1, 14
  %s8 = sxor.u32 4294967295, %s7
  %s10 = sshll.u32 %s0, 4
  %s11 = int_to_ptr.hbm [resolvable:$true] %s10
  %s12 = sshll.u32 %s1, 4
  %s13 = int_to_ptr.hbm [resolvable:$true] %s12
  %16 = dma.general %s11, 128, %s13, [#allocation2], [#allocation3], [#allocation4], 0, 0
  %s17 = smul.u32 8, 1
  %s18 = sshll.u32 %s17, 4
  %19 = dma.done [#allocation2], %s18
  %20 = vsyncmov [#allocation2]
  %s21 = vpop.sfrf %20
  %p22 = scmp.eq.s32.totalorder %s21, 0
  %p23 = pneg %p22
  %25 = shalt.err (%p23)

</llo_original>
